<compile_context>
chip_gen: v5e
topology: v5e:2x2
jax: 0.10.0
libtpu: 0.0.40
codegen_flags: <defaults>
</compile_context>

<pallas_src>
import math

import jax
import jax.numpy as jnp
from jax.experimental import pallas as pl
from jax.experimental.pallas import tpu as pltpu

# Problem dims (CartPole-like env): obs dim 4, 2 actions, hidden 50.
N_STATES = 4
N_ACTIONS = 2
HIDDEN = 50

# Padded dims used by the kernel.
LANES = 128        # lane width of the packed parameter / noise slabs
IN_LANES = 8       # input features padded 4 -> 8   (x last dim in HBM)
HID_LANES = 64     # hidden padded 50 -> 64
OUT_LANES = 8      # actions padded 2 -> 8          (out last dim in HBM)
NOISE_ROWS = 8

# Packed parameter-slab row layout (weights only; biases live in the noise
# slab because they are fused with the sampled noise).
W1_R0 = 0                       # rows [  0,  8): W1  stored (in, hidden), zero-padded
SW1_R0 = W1_R0 + IN_LANES       # rows [  8, 16): sigma_W1
W2_R0 = SW1_R0 + IN_LANES       # rows [ 16, 80): W2  stored (hidden, actions), zero-padded
SW2_R0 = W2_R0 + HID_LANES      # rows [ 80,144): sigma_W2
P_ROWS = SW2_R0 + HID_LANES     # 144 rows * 128 lanes * 4 B ~= 74 KB

# Noise/bias slab rows (values already passed through f(v)=sign(v)*sqrt(|v|)):
#   0: f(eps_in,  layer1)   lanes 0:4
#   1: f(eps_out, layer1)   lanes 0:50
#   2: f(eps_in,  layer2)   lanes 0:50
#   3: f(eps_out, layer2)   lanes 0:2
#   4: b1_eff = b1 + sb1*f(eps_out1)   lanes 0:50
#   5: b2_eff = b2 + sb2*f(eps_out2)   lanes 0:2
#   6,7: zero padding


def _noisy_net_kernel(x_ref, p_ref, n_ref, out_ref):
    """noisy-linear -> ReLU -> noisy-linear on one (TB, 8) batch tile."""
    x = x_ref[...]                                        # (TB, 8), cols >= 4 are 0

    ein1 = n_ref[0:1, 0:IN_LANES]                         # (1, 8)
    eout1 = n_ref[1:2, 0:HID_LANES]                       # (1, 64)
    ein2 = n_ref[2:3, 0:HID_LANES]                        # (1, 64)
    eout2 = n_ref[3:4, 0:OUT_LANES]                       # (1, 8)
    b1 = n_ref[4:5, 0:HID_LANES]                          # (1, 64) effective bias
    b2 = n_ref[5:6, 0:OUT_LANES]                          # (1, 8)  effective bias

    w1 = p_ref[W1_R0:W1_R0 + IN_LANES, 0:HID_LANES]       # (8, 64)   (in, hidden)
    sw1 = p_ref[SW1_R0:SW1_R0 + IN_LANES, 0:HID_LANES]    # (8, 64)
    w2 = p_ref[W2_R0:W2_R0 + HID_LANES, 0:OUT_LANES]      # (64, 8)   (hidden, actions)
    sw2 = p_ref[SW2_R0:SW2_R0 + HID_LANES, 0:OUT_LANES]   # (64, 8)

    # Layer 1:  x @ W1 + ((x*ein1) @ SW1)*eout1 + b1_eff ;  ReLU
    h = (jnp.dot(x, w1, preferred_element_type=jnp.float32)
         + jnp.dot(x * ein1, sw1, preferred_element_type=jnp.float32) * eout1
         + b1)
    h = jnp.maximum(h, 0.0)                               # (TB, 64); padded cols stay 0

    # Layer 2 (same identity).
    y = (jnp.dot(h, w2, preferred_element_type=jnp.float32)
         + jnp.dot(h * ein2, sw2, preferred_element_type=jnp.float32) * eout2
         + b2)                                            # (TB, 8)
    out_ref[...] = y.astype(out_ref.dtype)


def pack_params(p):
    """Pack torch-layout weights (w: (out,in)) into one padded (144,128) slab."""
    slab = jnp.zeros((P_ROWS, LANES), jnp.float32)
    slab = slab.at[W1_R0:W1_R0 + N_STATES, 0:HIDDEN].set(p["w1"].T)     # (in, hidden)
    slab = slab.at[SW1_R0:SW1_R0 + N_STATES, 0:HIDDEN].set(p["sw1"].T)
    slab = slab.at[W2_R0:W2_R0 + HIDDEN, 0:N_ACTIONS].set(p["w2"].T)    # (hidden, actions)
    slab = slab.at[SW2_R0:SW2_R0 + HIDDEN, 0:N_ACTIONS].set(p["sw2"].T)
    return slab


def pack_noise_and_bias(p, e):
    """Apply f(v)=sign*sqrt(|v|) host-side and fuse effective biases (8,128)."""
    f = lambda v: jnp.sign(v) * jnp.sqrt(jnp.abs(v))
    ein1 = f(e["ein1"][0])            # (N_STATES,)
    eout1 = f(e["eout1"][:, 0])       # (HIDDEN,)
    ein2 = f(e["ein2"][0])            # (HIDDEN,)
    eout2 = f(e["eout2"][:, 0])       # (N_ACTIONS,)
    b1_eff = p["b1"][0] + p["sb1"][0] * eout1
    b2_eff = p["b2"][0] + p["sb2"][0] * eout2
    n = jnp.zeros((NOISE_ROWS, LANES), jnp.float32)
    n = n.at[0, 0:N_STATES].set(ein1)
    n = n.at[1, 0:HIDDEN].set(eout1)
    n = n.at[2, 0:HIDDEN].set(ein2)
    n = n.at[3, 0:N_ACTIONS].set(eout2)
    n = n.at[4, 0:HIDDEN].set(b1_eff)
    n = n.at[5, 0:N_ACTIONS].set(b2_eff)
    return n


def _round_up(v, m):
    return ((v + m - 1) // m) * m


def noisy_net_forward(x, packed_params, packed_noise):
    """x: (B, N_STATES) float32  ->  (B, N_ACTIONS) float32 action values."""
    B = x.shape[0]
    B8 = _round_up(B, 8)
    # Batch tile: up to 1024 rows (VMEM footprint per tile is well under the
    # 16 MiB v5e scoped default, so no vmem_limit override needed).  Batches
    # larger than the cap are split into balanced tiles so the grid has >= 2
    # steps and "parallel" can shard them across both TCs on v7x.
    TB_CAP = 1024
    if B8 <= TB_CAP:
        TB = B8
    else:
        n_tiles = (B8 + TB_CAP - 1) // TB_CAP
        TB = _round_up((B8 + n_tiles - 1) // n_tiles, 8)
    B_pad = _round_up(B8, TB)

    # 8-lane x slab: 16x less HBM read traffic than a 128-lane slab.
    x_pad = jnp.zeros((B_pad, IN_LANES), jnp.float32).at[:B, :N_STATES].set(x)

    out = pl.pallas_call(
        _noisy_net_kernel,
        out_shape=jax.ShapeDtypeStruct((B_pad, OUT_LANES), jnp.float32),
        grid=(B_pad // TB,),
        in_specs=[
            pl.BlockSpec((TB, IN_LANES), lambda i: (i, 0)),       # x batch tile
            pl.BlockSpec((P_ROWS, LANES), lambda i: (0, 0)),      # param slab (constant
            pl.BlockSpec((NOISE_ROWS, LANES), lambda i: (0, 0)),  #  block idx -> DMA'd once)
        ],
        out_specs=pl.BlockSpec((TB, OUT_LANES), lambda i: (i, 0)),
        compiler_params=pltpu.CompilerParams(
            dimension_semantics=("parallel",)),                   # 2 TCs on v7x
    )(x_pad, packed_params, packed_noise)

    return out[:B, :N_ACTIONS]


def init_params(key):
    """Deterministic parameter init mirroring the torch module's __init__."""
    k = jax.random.split(key, 4)
    sigma1 = 0.4 / math.sqrt(N_STATES)   # sigma_zero / sqrt(in_features)
    sigma2 = 0.4 / math.sqrt(HIDDEN)
    bound1 = 1.0 / math.sqrt(N_STATES)   # nn.Linear default bias init range
    bound2 = 1.0 / math.sqrt(HIDDEN)
    return dict(
        w1=0.1 * jax.random.normal(k[0], (HIDDEN, N_STATES), jnp.float32),
        b1=jax.random.uniform(k[1], (1, HIDDEN), jnp.float32, -bound1, bound1),
        sw1=jnp.full((HIDDEN, N_STATES), sigma1, jnp.float32),
        sb1=jnp.full((1, HIDDEN), sigma1, jnp.float32),
        w2=0.1 * jax.random.normal(k[2], (N_ACTIONS, HIDDEN), jnp.float32),
        b2=jax.random.uniform(k[3], (1, N_ACTIONS), jnp.float32, -bound2, bound2),
        sw2=jnp.full((N_ACTIONS, HIDDEN), sigma2, jnp.float32),
        sb2=jnp.full((1, N_ACTIONS), sigma2, jnp.float32),
    )


def sample_noise(key):
    # TODO(synk): torch resamples eps in-place with torch.randn inside forward();
    # here fresh factorized noise is drawn host-side from a JAX PRNG key.
    k = jax.random.split(key, 4)
    return dict(
        ein1=jax.random.normal(k[0], (1, N_STATES), jnp.float32),
        eout1=jax.random.normal(k[1], (HIDDEN, 1), jnp.float32),
        ein2=jax.random.normal(k[2], (1, HIDDEN), jnp.float32),
        eout2=jax.random.normal(k[3], (N_ACTIONS, 1), jnp.float32),
    )


def _reference(x, p, e):
    """Pure-JAX reference of the torch forward pass (direct formulation)."""
    f = lambda v: jnp.sign(v) * jnp.sqrt(jnp.abs(v))
    w1 = p["w1"] + p["sw1"] * (f(e["eout1"]) * f(e["ein1"]))
    b1 = p["b1"] + p["sb1"] * f(e["eout1"]).T
    h = jnp.maximum(x @ w1.T + b1, 0.0)
    w2 = p["w2"] + p["sw2"] * (f(e["eout2"]) * f(e["ein2"]))
    b2 = p["b2"] + p["sb2"] * f(e["eout2"]).T
    return h @ w2.T + b2


if __name__ == "__main__":
    key = jax.random.PRNGKey(0)
    k_x, k_x2, k_p, k_e = jax.random.split(key, 4)

    params = init_params(k_p)
    eps = sample_noise(k_e)

    packed_params = pack_params(params)            # once per parameter update
    packed_noise = pack_noise_and_bias(params, eps)  # once per noise sample

    # Typical small acting batch.
    B = 8
    x = jax.random.normal(k_x, (B, N_STATES), jnp.float32)
    out = jax.block_until_ready(noisy_net_forward(x, packed_params, packed_noise))
    ref = _reference(x, params, eps)
    assert out.shape == (B, N_ACTIONS)
    assert jnp.allclose(out, ref, atol=1e-5, rtol=1e-5), "mismatch vs reference (B=8)"

    # Non-multiple-of-8 batch exercises row padding.
    x2 = jax.random.normal(k_x2, (3, N_STATES), jnp.float32)
    out2 = jax.block_until_ready(noisy_net_forward(x2, packed_params, packed_noise))
    ref2 = _reference(x2, params, eps)
    assert out2.shape == (3, N_ACTIONS)
    assert jnp.allclose(out2, ref2, atol=1e-5, rtol=1e-5), "mismatch vs reference (B=3)"

    print("KERNEL_OK")
</pallas_src>

<mosaic_0001>
module attributes {stable_mosaic.version = 11 : i64} {
  func.func @_noisy_net_kernel(%arg0: i32, %arg1: memref<8x8xf32, #tpu.memory_space<vmem>>, %arg2: memref<144x128xf32, #tpu.memory_space<vmem>>, %arg3: memref<8x128xf32, #tpu.memory_space<vmem>>, %arg4: memref<8x8xf32, #tpu.memory_space<vmem>>) attributes {dimension_semantics = [#tpu.dimension_semantics<parallel>], iteration_bounds = array<i64: 1>, scalar_prefetch = 0 : i64, scratch_operands = 0 : i64, tpu.core_type = #tpu.core_type<tc>, window_params = [{transform_indices = @transform_0, window_bounds = array<i64: 8, 8>}, {pipeline_mode = #tpu.pipeline_mode<synchronous>, transform_indices = @transform_1, window_bounds = array<i64: 144, 128>}, {pipeline_mode = #tpu.pipeline_mode<synchronous>, transform_indices = @transform_2, window_bounds = array<i64: 8, 128>}, {transform_indices = @transform_3, window_bounds = array<i64: 8, 8>}]} {
    %c0 = arith.constant 0 : index
    %c0_0 = arith.constant 0 : index
    %0 = vector.load %arg1[%c0, %c0_0] : memref<8x8xf32, #tpu.memory_space<vmem>>, vector<8x8xf32>
    %c0_1 = arith.constant 0 : index
    %c0_2 = arith.constant 0 : index
    %1 = vector.load %arg3[%c0_1, %c0_2] : memref<8x128xf32, #tpu.memory_space<vmem>>, vector<1x8xf32>
    %c1 = arith.constant 1 : index
    %c0_3 = arith.constant 0 : index
    %2 = vector.load %arg3[%c1, %c0_3] : memref<8x128xf32, #tpu.memory_space<vmem>>, vector<1x64xf32>
    %c2 = arith.constant 2 : index
    %c0_4 = arith.constant 0 : index
    %3 = vector.load %arg3[%c2, %c0_4] : memref<8x128xf32, #tpu.memory_space<vmem>>, vector<1x64xf32>
    %c3 = arith.constant 3 : index
    %c0_5 = arith.constant 0 : index
    %4 = vector.load %arg3[%c3, %c0_5] : memref<8x128xf32, #tpu.memory_space<vmem>>, vector<1x8xf32>
    %c4 = arith.constant 4 : index
    %c0_6 = arith.constant 0 : index
    %5 = vector.load %arg3[%c4, %c0_6] : memref<8x128xf32, #tpu.memory_space<vmem>>, vector<1x64xf32>
    %c5 = arith.constant 5 : index
    %c0_7 = arith.constant 0 : index
    %6 = vector.load %arg3[%c5, %c0_7] : memref<8x128xf32, #tpu.memory_space<vmem>>, vector<1x8xf32>
    %c0_8 = arith.constant 0 : index
    %c0_9 = arith.constant 0 : index
    %7 = vector.load %arg2[%c0_8, %c0_9] : memref<144x128xf32, #tpu.memory_space<vmem>>, vector<8x64xf32>
    %c8 = arith.constant 8 : index
    %c0_10 = arith.constant 0 : index
    %8 = vector.load %arg2[%c8, %c0_10] : memref<144x128xf32, #tpu.memory_space<vmem>>, vector<8x64xf32>
    %c16 = arith.constant 16 : index
    %c0_11 = arith.constant 0 : index
    %9 = vector.load %arg2[%c16, %c0_11] : memref<144x128xf32, #tpu.memory_space<vmem>>, vector<64x8xf32>
    %c80 = arith.constant 80 : index
    %c0_12 = arith.constant 0 : index
    %10 = vector.load %arg2[%c80, %c0_12] : memref<144x128xf32, #tpu.memory_space<vmem>>, vector<64x8xf32>
    %cst = arith.constant dense<0.000000e+00> : vector<8x64xf32>
    %11 = tpu.matmul %0, %7, %cst {dimension_numbers = #tpu.dot_dimension_numbers<[1], [0], [0], [1], [0, 0, 1, 1], [], []>} : vector<8x8xf32>, vector<8x64xf32>, vector<8x64xf32> -> vector<8x64xf32>
    %12 = vector.broadcast %1 : vector<1x8xf32> to vector<8x8xf32>
    %13 = arith.mulf %0, %12 : vector<8x8xf32>
    %cst_13 = arith.constant dense<0.000000e+00> : vector<8x64xf32>
    %14 = tpu.matmul %13, %8, %cst_13 {dimension_numbers = #tpu.dot_dimension_numbers<[1], [0], [0], [1], [0, 0, 1, 1], [], []>} : vector<8x8xf32>, vector<8x64xf32>, vector<8x64xf32> -> vector<8x64xf32>
    %15 = vector.broadcast %2 : vector<1x64xf32> to vector<8x64xf32>
    %16 = arith.mulf %14, %15 : vector<8x64xf32>
    %17 = arith.addf %11, %16 : vector<8x64xf32>
    %18 = vector.broadcast %5 : vector<1x64xf32> to vector<8x64xf32>
    %19 = arith.addf %17, %18 : vector<8x64xf32>
    %cst_14 = arith.constant 0.000000e+00 : f32
    %20 = vector.broadcast %cst_14 : f32 to vector<8x64xf32>
    %21 = arith.maximumf %19, %20 : vector<8x64xf32>
    %cst_15 = arith.constant dense<0.000000e+00> : vector<8x8xf32>
    %22 = tpu.matmul %21, %9, %cst_15 {dimension_numbers = #tpu.dot_dimension_numbers<[1], [0], [0], [1], [0, 0, 1, 1], [], []>} : vector<8x64xf32>, vector<64x8xf32>, vector<8x8xf32> -> vector<8x8xf32>
    %23 = vector.broadcast %3 : vector<1x64xf32> to vector<8x64xf32>
    %24 = arith.mulf %21, %23 : vector<8x64xf32>
    %cst_16 = arith.constant dense<0.000000e+00> : vector<8x8xf32>
    %25 = tpu.matmul %24, %10, %cst_16 {dimension_numbers = #tpu.dot_dimension_numbers<[1], [0], [0], [1], [0, 0, 1, 1], [], []>} : vector<8x64xf32>, vector<64x8xf32>, vector<8x8xf32> -> vector<8x8xf32>
    %26 = vector.broadcast %4 : vector<1x8xf32> to vector<8x8xf32>
    %27 = arith.mulf %25, %26 : vector<8x8xf32>
    %28 = arith.addf %22, %27 : vector<8x8xf32>
    %29 = vector.broadcast %6 : vector<1x8xf32> to vector<8x8xf32>
    %30 = arith.addf %28, %29 : vector<8x8xf32>
    %c0_17 = arith.constant 0 : index
    %c0_18 = arith.constant 0 : index
    %31 = vector.load %arg4[%c0_17, %c0_18] : memref<8x8xf32, #tpu.memory_space<vmem>>, vector<8x8xf32>
    tpu.vector_store %arg4[%c0_17, %c0_18], %30 {strides = array<i32>} : memref<8x8xf32, #tpu.memory_space<vmem>>, vector<8x8xf32>,
    return
  }
  func.func @transform_0(%arg0: i32) -> (i32, i32) {
    %c0_i32 = arith.constant 0 : i32
    %c0_i32_0 = arith.constant 0 : i32
    return %arg0, %c0_i32 : i32, i32
  }
  func.func @transform_1(%arg0: i32) -> (i32, i32) {
    %c0_i32 = arith.constant 0 : i32
    %c0_i32_0 = arith.constant 0 : i32
    %c0_i32_1 = arith.constant 0 : i32
    return %c0_i32, %c0_i32_0 : i32, i32
  }
  func.func @transform_2(%arg0: i32) -> (i32, i32) {
    %c0_i32 = arith.constant 0 : i32
    %c0_i32_0 = arith.constant 0 : i32
    %c0_i32_1 = arith.constant 0 : i32
    return %c0_i32, %c0_i32_0 : i32, i32
  }
  func.func @transform_3(%arg0: i32) -> (i32, i32) {
    %c0_i32 = arith.constant 0 : i32
    %c0_i32_0 = arith.constant 0 : i32
    return %arg0, %c0_i32 : i32, i32
  }
}

</mosaic_0001>

<llo_original>
// kernel: tpu_custom_call.1
$region0: #{tpu_custom_call.1}
  #allocation0 [shape = 'u32[]', space=smem, size = 0x4, offset = 0x4, fixed_abs, tag = 'smem constant byte address 0x4 - core index']
  #allocation1 [shape = 'u32[72,128]{1,0:T(1,128)}', space=vmem, size = 0x9000, scoped, tag = 'internal scratch']
  %s0 = inlined_call_operand.hbm [shape: f32[8,8], index: 0, kind: input, shape index: {}]
  %s1 = inlined_call_operand.hbm [shape: f32[144,128], index: 1, kind: input, shape index: {}]
  %s2 = inlined_call_operand.hbm [shape: f32[8,128], index: 2, kind: input, shape index: {}]
  %s3 = inlined_call_operand.hbm [shape: f32[8,8], index: 3, kind: output, shape index: {}]
  %s4 = sld [smem:[#allocation0]]
  $region34: #{tpu_custom_call.1} parent=0
    _
  %s6 = ssub.s32 1, %s4
  %s7 = scalar_select 0, %s6, %s4
  $region1: #{tpu_custom_call.1} parent=0
    #allocation2 [shape = 'u8[4096]{0}', space=vmem, size = 0x1000, scoped, tag = 'input window, operand 0, single buffered']
    #allocation3 [shape = 's32[1]{0}', space=sflag, size = 0x4, scoped, tag = 'scoped memory for tpu_custom_call.1']
    #allocation4 [shape = 's32[1]{0}', space=sflag, size = 0x4, scoped, tag = 'scoped memory for tpu_custom_call.1']
    #allocation5 [shape = 'u8[73728]{0}', space=vmem, size = 0x12000, scoped, tag = 'input window, operand 1, single buffered']
    #allocation6 [shape = 's32[1]{0}', space=sflag, size = 0x4, scoped, tag = 'scoped memory for tpu_custom_call.1']
    #allocation7 [shape = 'u8[4096]{0}', space=vmem, size = 0x1000, scoped, tag = 'input window, operand 2, single buffered']
    #allocation8 [shape = 'u8[4096]{0}', space=vmem, size = 0x1000, scoped, tag = 'output window, operand 0, single buffered']
    %8 = vsyncpa [#allocation3], 0
    %9 = vsyncpa [#allocation6], 0
    %10 = vsyncpa [#allocation4], 0
    // Predicated region
    $region2: #{tpu_custom_call.1} parent=1 // pred_check
      _
    $region3: #{tpu_custom_call.1} parent=1 // pred_check_branch
      %12 = sbr.rel (0) target = $region5
    $region4: #{tpu_custom_call.1} parent=1 // pred_region
      %14 = vsyncadd [#allocation3], 0
      %s16 = sshll.u32 %s0, 4
      %s17 = int_to_ptr.hbm [resolvable:$true] %s16
      %s18 = sshll.u32 [#allocation2], 4
      %s19 = int_to_ptr.vmem [resolvable:$true] %s18
      %21 = dma.hbm_to_vmem [thread:$0]  %s17, 128, %s19, [#allocation3]
    $region5: #{tpu_custom_call.1} parent=1 // pred_fallthru
      _
    // Predicated region
    $region6: #{tpu_custom_call.1} parent=1 // pred_check
      _
    $region7: #{tpu_custom_call.1} parent=1 // pred_check_branch
      %23 = sbr.rel (0) target = $region9
    $region8: #{tpu_custom_call.1} parent=1 // pred_region
      %25 = vsyncadd [#allocation6], 0
      %s26 = sshll.u32 %s1, 4
      %s27 = int_to_ptr.hbm [resolvable:$true] %s26
      %s28 = sshll.u32 [#allocation5], 4
      %s29 = int_to_ptr.vmem [resolvable:$true] %s28
      %34 = dma.hbm_to_vmem [thread:$0]  %s27, 2304, %s29, [#allocation6], 128, 128, 8
    $region9: #{tpu_custom_call.1} parent=1 // pred_fallthru
      _
    // Predicated region
    $region10: #{tpu_custom_call.1} parent=1 // pred_check
      _
    $region11: #{tpu_custom_call.1} parent=1 // pred_check_branch
      %36 = sbr.rel (0) target = $region13
    $region12: #{tpu_custom_call.1} parent=1 // pred_region
      %38 = vsyncadd [#allocation6], 0
      %s40 = sshll.u32 %s2, 4
      %s41 = int_to_ptr.hbm [resolvable:$true] %s40
      %s42 = sshll.u32 [#allocation7], 4
      %s43 = int_to_ptr.vmem [resolvable:$true] %s42
      %45 = dma.hbm_to_vmem [thread:$0]  %s41, 128, %s43, [#allocation6]
    $region13: #{tpu_custom_call.1} parent=1 // pred_fallthru
      _
    // Predicated region
    $region14: #{tpu_custom_call.1} parent=1 // pred_check
      _
    $region15: #{tpu_custom_call.1} parent=1 // pred_check_branch
      %47 = sbr.rel (0) target = $region17
    $region16: #{tpu_custom_call.1} parent=1 // pred_region
      %49 = dma.done [#allocation3], 128
    $region17: #{tpu_custom_call.1} parent=1 // pred_fallthru
      _
    // Predicated region
    $region18: #{tpu_custom_call.1} parent=1 // pred_check
      _
    $region19: #{tpu_custom_call.1} parent=1 // pred_check_branch
      %51 = sbr.rel (0) target = $region21
    $region20: #{tpu_custom_call.1} parent=1 // pred_region
      %53 = dma.done [#allocation6], 2304
    $region21: #{tpu_custom_call.1} parent=1 // pred_fallthru
      _
    // Predicated region
    $region22: #{tpu_custom_call.1} parent=1 // pred_check
      _
    $region23: #{tpu_custom_call.1} parent=1 // pred_check_branch
      %55 = sbr.rel (0) target = $region25
    $region24: #{tpu_custom_call.1} parent=1 // pred_region
      %57 = dma.done [#allocation6], 128
    $region25: #{tpu_custom_call.1} parent=1 // pred_fallthru
      _
    %v58 = vld [vmem:[#allocation2] sm:$0xff]
    %v59 = vld [vmem:[#allocation7] sm:$0x1]
    %v60 = vld [vmem:[#allocation7 + $0x1] sm:$0x1]
    %v61 = vld [vmem:[#allocation7 + $0x2] sm:$0x1]
    %v62 = vld [vmem:[#allocation7 + $0x3] sm:$0x1]
    %v63 = vld [vmem:[#allocation7 + $0x4] sm:$0x1]
    %v64 = vld [vmem:[#allocation7 + $0x5] sm:$0x1]
    %v65 = vld [vmem:[#allocation5] sm:$0xff]
    %v66 = vld [vmem:[#allocation5 + $0x8] sm:$0xff]
    %v67 = vld [vmem:[#allocation5 + $0x10] sm:$0xff]
    %v68 = vld [vmem:[#allocation5 + $0x18] sm:$0xff]
    %v69 = vld [vmem:[#allocation5 + $0x20] sm:$0xff]
    %v70 = vld [vmem:[#allocation5 + $0x28] sm:$0xff]
    %v71 = vld [vmem:[#allocation5 + $0x30] sm:$0xff]
    %v72 = vld [vmem:[#allocation5 + $0x38] sm:$0xff]
    %v73 = vld [vmem:[#allocation5 + $0x40] sm:$0xff]
    %v74 = vld [vmem:[#allocation5 + $0x48] sm:$0xff]
    %v75 = vld [vmem:[#allocation5 + $0x50] sm:$0xff]
    %v76 = vld [vmem:[#allocation5 + $0x58] sm:$0xff]
    %v77 = vld [vmem:[#allocation5 + $0x60] sm:$0xff]
    %v78 = vld [vmem:[#allocation5 + $0x68] sm:$0xff]
    %v79 = vld [vmem:[#allocation5 + $0x70] sm:$0xff]
    %v80 = vld [vmem:[#allocation5 + $0x78] sm:$0xff]
    %v81 = vld [vmem:[#allocation5 + $0x80] sm:$0xff]
    %v82 = vld [vmem:[#allocation5 + $0x88] sm:$0xff]
    %v83 = vperm.slane %v59, 0
    %v84 = vmul.f32 %v58, %v83
    %vm85 = vcmask 64512
    %v87 = vsel %vm85, %v84, 0
    %89 = vmatpush.msra.mxu0 0.0
    %90 = vmatpush.msra.mxu0 0.0
    %91 = vmatpush.msra.mxu0 0.0
    %92 = vmatpush.msra.mxu0 0.0
    %93 = vmatpush.msra.mxu0 0.0
    %94 = vmatpush.msra.mxu0 0.0
    %95 = vmatpush.msra.mxu0 0.0
    %96 = vmatpush.msra.mxu0 0.0
    %97 = vmatpush.msra.mxu0 0.0
    %98 = vmatpush.msra.mxu0 0.0
    %99 = vmatpush.msra.mxu0 0.0
    %100 = vmatpush.msra.mxu0 0.0
    %101 = vmatpush.msra.mxu0 0.0
    %102 = vmatpush.msra.mxu0 0.0
    %103 = vmatpush.msra.mxu0 0.0
    %104 = vmatpush.msra.mxu0 %v66
    %105 = vmatmul.f32.gmra.mxu0 %v87
    %v106 = vpop.f32.mrf.mxu0
    %v107 = vadd.f32 0.0, %v106
    %108 = vdwg.mxu0
    %v109 = vperm.slane %v60, 0
    %v110 = vmul.f32 %v107, %v109
    %v112 = vsel %vm85, %v58, 0
    %114 = vmatpush.msra.mxu0 0.0
    %115 = vmatpush.msra.mxu0 0.0
    %116 = vmatpush.msra.mxu0 0.0
    %117 = vmatpush.msra.mxu0 0.0
    %118 = vmatpush.msra.mxu0 0.0
    %119 = vmatpush.msra.mxu0 0.0
    %120 = vmatpush.msra.mxu0 0.0
    %121 = vmatpush.msra.mxu0 0.0
    %122 = vmatpush.msra.mxu0 0.0
    %123 = vmatpush.msra.mxu0 0.0
    %124 = vmatpush.msra.mxu0 0.0
    %125 = vmatpush.msra.mxu0 0.0
    %126 = vmatpush.msra.mxu0 0.0
    %127 = vmatpush.msra.mxu0 0.0
    %128 = vmatpush.msra.mxu0 0.0
    %129 = vmatpush.msra.mxu0 %v65
    %130 = vmatmul.f32.gmra.mxu0 %v112
    %v131 = vpop.f32.mrf.mxu0
    %v132 = vadd.f32 %v110, %v131
    %133 = vdwg.mxu0
    %v134 = vperm.slane %v63, 0
    %v135 = vadd.f32 %v132, %v134
    %v136 = vmax.f32 %v135, 0.0
    %v137 = vperm.slane %v61, 0
    %v138 = vmul.f32 %v136, %v137
    %vm139 = vcmask 523264
    %v141 = vsel %vm139, %v138, 0
    %143 = vmatpush.msra.mxu0 0.0
    %144 = vmatpush.msra.mxu0 0.0
    %145 = vmatpush.msra.mxu0 0.0
    %146 = vmatpush.msra.mxu0 0.0
    %147 = vmatpush.msra.mxu0 0.0
    %148 = vmatpush.msra.mxu0 0.0
    %149 = vmatpush.msra.mxu0 0.0
    %150 = vmatpush.msra.mxu0 0.0
    %151 = vmatpush.msra.mxu0 %v82
    %152 = vmatpush.msra.mxu0 %v81
    %153 = vmatpush.msra.mxu0 %v80
    %154 = vmatpush.msra.mxu0 %v79
    %155 = vmatpush.msra.mxu0 %v78
    %156 = vmatpush.msra.mxu0 %v77
    %157 = vmatpush.msra.mxu0 %v76
    %158 = vmatpush.msra.mxu0 %v75
    %159 = vmatmul.f32.gmra.mxu0 %v141
    %v160 = vpop.f32.mrf.mxu0
    %v161 = vadd.f32 0.0, %v160
    %162 = vdwg.mxu0
    %v163 = vperm.slane %v62, 0
    %v164 = vmul.f32 %v161, %v163
    %v166 = vsel %vm139, %v136, 0
    %168 = vmatpush.msra.mxu0 0.0
    %169 = vmatpush.msra.mxu0 0.0
    %170 = vmatpush.msra.mxu0 0.0
    %171 = vmatpush.msra.mxu0 0.0
    %172 = vmatpush.msra.mxu0 0.0
    %173 = vmatpush.msra.mxu0 0.0
    %174 = vmatpush.msra.mxu0 0.0
    %175 = vmatpush.msra.mxu0 0.0
    %176 = vmatpush.msra.mxu0 %v74
    %177 = vmatpush.msra.mxu0 %v73
    %178 = vmatpush.msra.mxu0 %v72
    %179 = vmatpush.msra.mxu0 %v71
    %180 = vmatpush.msra.mxu0 %v70
    %181 = vmatpush.msra.mxu0 %v69
    %182 = vmatpush.msra.mxu0 %v68
    %183 = vmatpush.msra.mxu0 %v67
    %184 = vmatmul.f32.gmra.mxu0 %v166
    %v185 = vpop.f32.mrf.mxu0
    %v186 = vadd.f32 %v164, %v185
    %187 = vdwg.mxu0
    %v188 = vperm.slane %v64, 0
    %v189 = vadd.f32 %v186, %v188
    %190 = vst.msk [vmem:[#allocation8] sm:$0xff] %vm85, %v189
    // Predicated region
    $region26: #{tpu_custom_call.1} parent=1 // pred_check
      _
    $region27: #{tpu_custom_call.1} parent=1 // pred_check_branch
      %192 = sbr.rel (0) target = $region29
    $region28: #{tpu_custom_call.1} parent=1 // pred_region
      %194 = vsyncadd [#allocation4], 0
      %s196 = sshll.u32 [#allocation8], 4
      %s197 = int_to_ptr.vmem [resolvable:$true] %s196
      %s198 = sshll.u32 %s3, 4
      %s199 = int_to_ptr.hbm [resolvable:$true] %s198
      %201 = dma.vmem_to_hbm [thread:$0]  %s197, 128, %s199, [#allocation4]
    $region29: #{tpu_custom_call.1} parent=1 // pred_fallthru
      _
    // Predicated region
    $region30: #{tpu_custom_call.1} parent=1 // pred_check
      _
    $region31: #{tpu_custom_call.1} parent=1 // pred_check_branch
      %203 = sbr.rel (0) target = $region33
    $region32: #{tpu_custom_call.1} parent=1 // pred_region
      %205 = dma.done [#allocation4], 128
    $region33: #{tpu_custom_call.1} parent=1 // pred_fallthru
      _
    %206 = vsyncpa [#allocation3], 1
    %207 = vsyncpa [#allocation6], 1
    %208 = vsyncpa [#allocation4], 1

</llo_original>
